<compile_context>
chip_gen: v7x
topology: tpu7x:2x2x1
jax: 0.10.0
libtpu: 0.0.40
codegen_flags: <defaults>
</compile_context>

<pallas_src>
import functools

import jax
import jax.numpy as jnp
from jax import lax
from jax.experimental import pallas as pl
from jax.experimental.pallas import tpu as pltpu


# ----------------------------- Pallas kernel --------------------------------
def _mlp_kernel(x_num_ref, x_id_ref, emb_ref, w1n_ref, w1e_ref, b1_ref,
                w2_ref, b2_ref, w3_ref, b3_ref, o_ref, *, cat_offsets):
    # x_num: (T, src_num_dim) f32     x_id : (T, n_cat) i32
    # emb  : (total_cat, id_dim) bf16 (block-diagonal combined table)
    # w1n  : (src_num_dim, H) bf16    w1e  : (id_dim, H) bf16    b1: (1, H) f32
    # w2   : (H, H) bf16              b2   : (1, H) f32
    # w3   : (1, H) bf16 (row form of Linear(H, 1).weight)       b3: (1, 1) f32
    # o    : (1, T) f32  (lane-dense output)
    T = x_id_ref.shape[0]
    total_cat = emb_ref.shape[0]

    # Fused embedding gather: combined one-hot (offsets bake each feature into its
    # own row range of the block-diagonal table) -> one small MXU pass.
    ids = x_id_ref[...]                                            # (T, n_cat)
    col = lax.broadcasted_iota(jnp.int32, (T, total_cat), 1)
    onehot = jnp.zeros((T, total_cat), jnp.float32)
    for i, off in enumerate(cat_offsets):                          # static tiny loop
        onehot += (col == (ids[:, i:i + 1] + off)).astype(jnp.float32)
    x_emb = jnp.dot(onehot.astype(jnp.bfloat16), emb_ref[...],
                    preferred_element_type=jnp.float32)            # (T, id_dim)

    # Layer 1 (w1 split over [x_num | x_emb] avoids an in-kernel concat).
    h1 = (jnp.dot(x_num_ref[...].astype(jnp.bfloat16), w1n_ref[...],
                  preferred_element_type=jnp.float32)
          + jnp.dot(x_emb.astype(jnp.bfloat16), w1e_ref[...],
                    preferred_element_type=jnp.float32)
          + b1_ref[...])
    h1 = jnp.maximum(h1, 0.0)                                      # Dropout = identity (eval)

    # Layer 2.
    h2 = jnp.dot(h1.astype(jnp.bfloat16), w2_ref[...],
                 preferred_element_type=jnp.float32) + b2_ref[...]
    h2 = jnp.maximum(h2, 0.0)

    # Layer 3, lane-dense: contract H against H -> (1, T); no (T, 1) masked stores.
    y = lax.dot_general(w3_ref[...], h2.astype(jnp.bfloat16),
                        dimension_numbers=(((1,), (1,)), ((), ())),
                        preferred_element_type=jnp.float32)
    o_ref[...] = y + b3_ref[...]


def _choose_tile(batch):
    if batch >= 512:
        return 512                       # big tiles amortize ~0.35us/step overhead
    return max(8, ((batch + 7) // 8) * 8)  # single full-array tile for tiny batches


def mlp_forward_pallas(x_num, x_id, *, emb_comb, w1_num, w1_emb, b1, w2, b2,
                       w3_row, b3, cat_offsets):
    B, src_num_dim = x_num.shape
    n_cat = x_id.shape[1]
    total_cat, id_dim = emb_comb.shape
    H = w2.shape[0]

    T = _choose_tile(B)
    n_tiles = -(-B // T)
    B_pad = n_tiles * T
    if B_pad != B:
        x_num = jnp.pad(x_num, ((0, B_pad - B), (0, 0)))
        x_id = jnp.pad(x_id, ((0, B_pad - B), (0, 0)))

    flops = 2 * B_pad * (total_cat * id_dim + src_num_dim * H + id_dim * H + H * H + H)
    param_bytes = 2 * (emb_comb.size + w1_num.size + w1_emb.size + w2.size + w3_row.size) \
        + 4 * (b1.size + b2.size + b3.size)
    bytes_accessed = B_pad * (4 * src_num_dim + 4 * n_cat + 4) + param_bytes

    kernel = functools.partial(_mlp_kernel, cat_offsets=tuple(cat_offsets))

    out = pl.pallas_call(
        kernel,
        out_shape=jax.ShapeDtypeStruct((1, B_pad), jnp.float32),
        grid_spec=pltpu.PrefetchScalarGridSpec(
            num_scalar_prefetch=0,
            grid=(n_tiles,),
            in_specs=[
                pl.BlockSpec((T, src_num_dim), lambda i: (i, 0)),    # activations stream
                pl.BlockSpec((T, n_cat), lambda i: (i, 0)),
                pl.BlockSpec((total_cat, id_dim), lambda i: (0, 0)),  # weights: constant
                pl.BlockSpec((src_num_dim, H), lambda i: (0, 0)),     # index_map => DMA'd
                pl.BlockSpec((id_dim, H), lambda i: (0, 0)),          # once, VMEM-resident
                pl.BlockSpec((1, H), lambda i: (0, 0)),
                pl.BlockSpec((H, H), lambda i: (0, 0)),
                pl.BlockSpec((1, H), lambda i: (0, 0)),
                pl.BlockSpec((1, H), lambda i: (0, 0)),
                pl.BlockSpec((1, 1), lambda i: (0, 0)),
            ],
            out_specs=pl.BlockSpec((1, T), lambda i: (0, i)),
        ),
        compiler_params=pltpu.CompilerParams(dimension_semantics=("parallel",)),
        cost_estimate=pl.CostEstimate(flops=flops, transcendentals=0,
                                      bytes_accessed=bytes_accessed),
    )(x_num, x_id, emb_comb, w1_num, w1_emb, b1, w2, b2, w3_row, b3)

    return out.reshape(B_pad)[:B]


# ----------------------------- Model wrapper ---------------------------------
class MLPParams:
    def __init__(self, key, hyperparams):
        self.src_num_dim = hyperparams["src_num_dim"]
        self.n_categories = hyperparams["n_categories"]
        self.emb_dim = hyperparams["emb_dim"]
        self.hidden = hyperparams["hidden"]
        self.bn = hyperparams["bn"]
        self.id_dim = self.emb_dim * len(self.n_categories)
        d_in = self.src_num_dim + self.id_dim
        H = self.hidden

        keys = jax.random.split(key, len(self.n_categories) + 3)
        # Embedding tables ~ N(0,1) (torch default for nn.Embedding).
        self.emb_tables = [
            jax.random.normal(keys[i], (n, self.emb_dim), jnp.float32)
            for i, n in enumerate(self.n_categories)
        ]
        # Kaiming-normal-ish init, zero biases — matches _init_weights intent.
        k1, k2, k3 = keys[-3], keys[-2], keys[-1]
        self.w1 = jax.random.normal(k1, (d_in, H), jnp.float32) * jnp.sqrt(2.0 / d_in)
        self.b1 = jnp.zeros((1, H), jnp.float32)
        self.w2 = jax.random.normal(k2, (H, H), jnp.float32) * jnp.sqrt(2.0 / H)
        self.b2 = jnp.zeros((1, H), jnp.float32)
        self.w3 = jax.random.normal(k3, (H, 1), jnp.float32) * jnp.sqrt(2.0 / H)
        self.b3 = jnp.zeros((1, 1), jnp.float32)

        # ---- precomputed kernel operands (bf16 MXU inputs, f32 biases) ----
        total_cat = sum(self.n_categories)
        offsets, acc = [], 0
        emb_comb = jnp.zeros((total_cat, self.id_dim), jnp.float32)
        for i, tbl in enumerate(self.emb_tables):
            offsets.append(acc)
            emb_comb = emb_comb.at[acc:acc + tbl.shape[0],
                                   i * self.emb_dim:(i + 1) * self.emb_dim].set(tbl)
            acc += tbl.shape[0]
        self.cat_offsets = tuple(offsets)
        self.emb_comb_bf16 = emb_comb.astype(jnp.bfloat16)
        self.w1_num_bf16 = self.w1[: self.src_num_dim].astype(jnp.bfloat16)
        self.w1_emb_bf16 = self.w1[self.src_num_dim:].astype(jnp.bfloat16)
        self.w2_bf16 = self.w2.astype(jnp.bfloat16)
        self.w3_row_bf16 = self.w3.T.astype(jnp.bfloat16)          # (1, H)

    def forward(self, x_num, x_id):
        return mlp_forward_pallas(
            x_num, x_id,
            emb_comb=self.emb_comb_bf16,
            w1_num=self.w1_num_bf16, w1_emb=self.w1_emb_bf16, b1=self.b1,
            w2=self.w2_bf16, b2=self.b2,
            w3_row=self.w3_row_bf16, b3=self.b3,
            cat_offsets=self.cat_offsets)


# ----------------------------- Reference checks --------------------------------
def reference_forward_bf16(params, x_num, x_id):
    """Plain-JAX reference emulating the kernel's bf16-operand / f32-accumulate math."""
    bf = jnp.bfloat16
    embs = [tbl.astype(bf)[x_id[:, i]] for i, tbl in enumerate(params.emb_tables)]
    x_all = jnp.concatenate([x_num.astype(bf)] + embs, axis=1)
    h1 = jnp.dot(x_all, params.w1.astype(bf), preferred_element_type=jnp.float32) + params.b1
    h1 = jnp.maximum(h1, 0.0)
    h2 = jnp.dot(h1.astype(bf), params.w2.astype(bf),
                 preferred_element_type=jnp.float32) + params.b2
    h2 = jnp.maximum(h2, 0.0)
    out = jnp.dot(h2.astype(bf), params.w3.astype(bf),
                  preferred_element_type=jnp.float32) + params.b3
    return jnp.squeeze(out)


def reference_forward_f32(params, x_num, x_id):
    embs = [tbl[x_id[:, i]] for i, tbl in enumerate(params.emb_tables)]
    x_all = jnp.concatenate([x_num] + embs, axis=1)
    h1 = jnp.maximum(x_all @ params.w1 + params.b1, 0.0)
    h2 = jnp.maximum(h1 @ params.w2 + params.b2, 0.0)
    return jnp.squeeze(h2 @ params.w3 + params.b3)


if __name__ == "__main__":
    hyperparams = {
        "src_num_dim": 6,
        "n_categories": [5, 7, 11],
        "emb_dim": 4,
        "dropout_id": 0.1,
        "dropout_num": 0.1,
        "hidden": 32,
        "bn": False,
    }
    key = jax.random.PRNGKey(0)
    kp, kx, ki = jax.random.split(key, 3)

    params = MLPParams(kp, hyperparams)

    B = 8
    x_num = jax.random.normal(kx, (B, hyperparams["src_num_dim"]), jnp.float32)
    x_id = jnp.stack(
        [
            jax.random.randint(jax.random.fold_in(ki, j), (B,), 0, n, jnp.int32)
            for j, n in enumerate(hyperparams["n_categories"])
        ],
        axis=1,
    )

    out = params.forward(x_num, x_id)
    out = jax.block_until_ready(out)

    ref_bf16 = reference_forward_bf16(params, x_num, x_id)
    ref_f32 = reference_forward_f32(params, x_num, x_id)

    assert out.shape == (B,)
    assert jnp.allclose(out, ref_bf16, atol=1e-3, rtol=1e-3)   # same bf16-operand math
    assert jnp.allclose(out, ref_f32, atol=2e-1, rtol=2e-1)    # coarse vs full-f32 model

    print("KERNEL_OK")
</pallas_src>

<mosaic_0001>
module attributes {stable_mosaic.version = 11 : i64} {
  func.func @_mlp_kernel(%arg0: i32, %arg1: memref<8x6xf32, #tpu.memory_space<vmem>>, %arg2: memref<8x3xi32, #tpu.memory_space<vmem>>, %arg3: memref<23x12xbf16, #tpu.memory_space<vmem>>, %arg4: memref<6x32xbf16, #tpu.memory_space<vmem>>, %arg5: memref<12x32xbf16, #tpu.memory_space<vmem>>, %arg6: memref<1x32xf32, #tpu.memory_space<vmem>>, %arg7: memref<32x32xbf16, #tpu.memory_space<vmem>>, %arg8: memref<1x32xf32, #tpu.memory_space<vmem>>, %arg9: memref<1x32xbf16, #tpu.memory_space<vmem>>, %arg10: memref<1x1xf32, #tpu.memory_space<vmem>>, %arg11: memref<1x8xf32, #tpu.memory_space<vmem>>) attributes {dimension_semantics = [#tpu.dimension_semantics<parallel>], iteration_bounds = array<i64: 1>, scalar_prefetch = 0 : i64, scratch_operands = 0 : i64, tpu.core_type = #tpu.core_type<tc>, window_params = [{transform_indices = @transform_0, window_bounds = array<i64: 8, 6>}, {transform_indices = @transform_1, window_bounds = array<i64: 8, 3>}, {pipeline_mode = #tpu.pipeline_mode<synchronous>, transform_indices = @transform_2, window_bounds = array<i64: 23, 12>}, {pipeline_mode = #tpu.pipeline_mode<synchronous>, transform_indices = @transform_3, window_bounds = array<i64: 6, 32>}, {pipeline_mode = #tpu.pipeline_mode<synchronous>, transform_indices = @transform_4, window_bounds = array<i64: 12, 32>}, {pipeline_mode = #tpu.pipeline_mode<synchronous>, transform_indices = @transform_5, window_bounds = array<i64: 1, 32>}, {pipeline_mode = #tpu.pipeline_mode<synchronous>, transform_indices = @transform_6, window_bounds = array<i64: 32, 32>}, {pipeline_mode = #tpu.pipeline_mode<synchronous>, transform_indices = @transform_7, window_bounds = array<i64: 1, 32>}, {pipeline_mode = #tpu.pipeline_mode<synchronous>, transform_indices = @transform_8, window_bounds = array<i64: 1, 32>}, {pipeline_mode = #tpu.pipeline_mode<synchronous>, transform_indices = @transform_9, window_bounds = array<i64: 1, 1>}, {transform_indices = @transform_10, window_bounds = array<i64: 1, 8>}]} {
    %c0 = arith.constant 0 : index
    %c0_0 = arith.constant 0 : index
    %0 = vector.load %arg2[%c0, %c0_0] : memref<8x3xi32, #tpu.memory_space<vmem>>, vector<8x3xi32>
    %1 = tpu.iota {dimensions = array<i32: 1>} : vector<8x23xi32>
    %cst = arith.constant 0.000000e+00 : f32
    %2 = vector.broadcast %cst : f32 to vector<8x23xf32>
    %3 = vector.extract_strided_slice %0 {offsets = [0, 0], sizes = [8, 1], strides = [1, 1]} : vector<8x3xi32> to vector<8x1xi32>
    %c0_i32 = arith.constant 0 : i32
    %4 = vector.broadcast %c0_i32 : i32 to vector<8x1xi32>
    %5 = arith.addi %3, %4 : vector<8x1xi32>
    %6 = vector.broadcast %5 : vector<8x1xi32> to vector<8x23xi32>
    %7 = arith.cmpi eq, %1, %6 : vector<8x23xi32>
    %8 = arith.extui %7 : vector<8x23xi1> to vector<8x23xi32>
    %9 = arith.sitofp %8 : vector<8x23xi32> to vector<8x23xf32>
    %10 = arith.addf %2, %9 : vector<8x23xf32>
    %11 = vector.extract_strided_slice %0 {offsets = [0, 1], sizes = [8, 1], strides = [1, 1]} : vector<8x3xi32> to vector<8x1xi32>
    %c5_i32 = arith.constant 5 : i32
    %12 = vector.broadcast %c5_i32 : i32 to vector<8x1xi32>
    %13 = arith.addi %11, %12 : vector<8x1xi32>
    %14 = vector.broadcast %13 : vector<8x1xi32> to vector<8x23xi32>
    %15 = arith.cmpi eq, %1, %14 : vector<8x23xi32>
    %16 = arith.extui %15 : vector<8x23xi1> to vector<8x23xi32>
    %17 = arith.sitofp %16 : vector<8x23xi32> to vector<8x23xf32>
    %18 = arith.addf %10, %17 : vector<8x23xf32>
    %19 = vector.extract_strided_slice %0 {offsets = [0, 2], sizes = [8, 1], strides = [1, 1]} : vector<8x3xi32> to vector<8x1xi32>
    %c12_i32 = arith.constant 12 : i32
    %20 = vector.broadcast %c12_i32 : i32 to vector<8x1xi32>
    %21 = arith.addi %19, %20 : vector<8x1xi32>
    %22 = vector.broadcast %21 : vector<8x1xi32> to vector<8x23xi32>
    %23 = arith.cmpi eq, %1, %22 : vector<8x23xi32>
    %24 = arith.extui %23 : vector<8x23xi1> to vector<8x23xi32>
    %25 = arith.sitofp %24 : vector<8x23xi32> to vector<8x23xf32>
    %26 = arith.addf %18, %25 : vector<8x23xf32>
    %27 = arith.truncf %26 : vector<8x23xf32> to vector<8x23xbf16>
    %c0_1 = arith.constant 0 : index
    %c0_2 = arith.constant 0 : index
    %28 = vector.load %arg3[%c0_1, %c0_2] : memref<23x12xbf16, #tpu.memory_space<vmem>>, vector<23x12xbf16>
    %cst_3 = arith.constant dense<0.000000e+00> : vector<8x12xf32>
    %29 = tpu.matmul %27, %28, %cst_3 {dimension_numbers = #tpu.dot_dimension_numbers<[1], [0], [0], [1], [0, 0, 1, 1], [], []>} : vector<8x23xbf16>, vector<23x12xbf16>, vector<8x12xf32> -> vector<8x12xf32>
    %c0_4 = arith.constant 0 : index
    %c0_5 = arith.constant 0 : index
    %30 = vector.load %arg1[%c0_4, %c0_5] : memref<8x6xf32, #tpu.memory_space<vmem>>, vector<8x6xf32>
    %31 = arith.truncf %30 : vector<8x6xf32> to vector<8x6xbf16>
    %c0_6 = arith.constant 0 : index
    %c0_7 = arith.constant 0 : index
    %32 = vector.load %arg4[%c0_6, %c0_7] : memref<6x32xbf16, #tpu.memory_space<vmem>>, vector<6x32xbf16>
    %cst_8 = arith.constant dense<0.000000e+00> : vector<8x32xf32>
    %33 = tpu.matmul %31, %32, %cst_8 {dimension_numbers = #tpu.dot_dimension_numbers<[1], [0], [0], [1], [0, 0, 1, 1], [], []>} : vector<8x6xbf16>, vector<6x32xbf16>, vector<8x32xf32> -> vector<8x32xf32>
    %34 = arith.truncf %29 : vector<8x12xf32> to vector<8x12xbf16>
    %c0_9 = arith.constant 0 : index
    %c0_10 = arith.constant 0 : index
    %35 = vector.load %arg5[%c0_9, %c0_10] : memref<12x32xbf16, #tpu.memory_space<vmem>>, vector<12x32xbf16>
    %cst_11 = arith.constant dense<0.000000e+00> : vector<8x32xf32>
    %36 = tpu.matmul %34, %35, %cst_11 {dimension_numbers = #tpu.dot_dimension_numbers<[1], [0], [0], [1], [0, 0, 1, 1], [], []>} : vector<8x12xbf16>, vector<12x32xbf16>, vector<8x32xf32> -> vector<8x32xf32>
    %37 = arith.addf %33, %36 : vector<8x32xf32>
    %c0_12 = arith.constant 0 : index
    %c0_13 = arith.constant 0 : index
    %38 = vector.load %arg6[%c0_12, %c0_13] : memref<1x32xf32, #tpu.memory_space<vmem>>, vector<1x32xf32>
    %39 = vector.broadcast %38 : vector<1x32xf32> to vector<8x32xf32>
    %40 = arith.addf %37, %39 : vector<8x32xf32>
    %cst_14 = arith.constant 0.000000e+00 : f32
    %41 = vector.broadcast %cst_14 : f32 to vector<8x32xf32>
    %42 = arith.maximumf %40, %41 : vector<8x32xf32>
    %43 = arith.truncf %42 : vector<8x32xf32> to vector<8x32xbf16>
    %c0_15 = arith.constant 0 : index
    %c0_16 = arith.constant 0 : index
    %44 = vector.load %arg7[%c0_15, %c0_16] : memref<32x32xbf16, #tpu.memory_space<vmem>>, vector<32x32xbf16>
    %cst_17 = arith.constant dense<0.000000e+00> : vector<8x32xf32>
    %45 = tpu.matmul %43, %44, %cst_17 {dimension_numbers = #tpu.dot_dimension_numbers<[1], [0], [0], [1], [0, 0, 1, 1], [], []>} : vector<8x32xbf16>, vector<32x32xbf16>, vector<8x32xf32> -> vector<8x32xf32>
    %c0_18 = arith.constant 0 : index
    %c0_19 = arith.constant 0 : index
    %46 = vector.load %arg8[%c0_18, %c0_19] : memref<1x32xf32, #tpu.memory_space<vmem>>, vector<1x32xf32>
    %47 = vector.broadcast %46 : vector<1x32xf32> to vector<8x32xf32>
    %48 = arith.addf %45, %47 : vector<8x32xf32>
    %cst_20 = arith.constant 0.000000e+00 : f32
    %49 = vector.broadcast %cst_20 : f32 to vector<8x32xf32>
    %50 = arith.maximumf %48, %49 : vector<8x32xf32>
    %c0_21 = arith.constant 0 : index
    %c0_22 = arith.constant 0 : index
    %51 = vector.load %arg9[%c0_21, %c0_22] : memref<1x32xbf16, #tpu.memory_space<vmem>>, vector<1x32xbf16>
    %52 = arith.truncf %50 : vector<8x32xf32> to vector<8x32xbf16>
    %cst_23 = arith.constant dense<0.000000e+00> : vector<1x8xf32>
    %53 = tpu.matmul %51, %52, %cst_23 {dimension_numbers = #tpu.dot_dimension_numbers<[1], [1], [0], [0], [0, 0, 1, 0], [], []>} : vector<1x32xbf16>, vector<8x32xbf16>, vector<1x8xf32> -> vector<1x8xf32>
    %c0_24 = arith.constant 0 : index
    %c0_25 = arith.constant 0 : index
    %54 = vector.load %arg10[%c0_24, %c0_25] : memref<1x1xf32, #tpu.memory_space<vmem>>, vector<1x1xf32>
    %55 = vector.broadcast %54 : vector<1x1xf32> to vector<1x8xf32>
    %56 = arith.addf %53, %55 : vector<1x8xf32>
    %c0_26 = arith.constant 0 : index
    %c0_27 = arith.constant 0 : index
    %57 = vector.load %arg11[%c0_26, %c0_27] : memref<1x8xf32, #tpu.memory_space<vmem>>, vector<1x8xf32>
    tpu.vector_store %arg11[%c0_26, %c0_27], %56 {strides = array<i32>} : memref<1x8xf32, #tpu.memory_space<vmem>>, vector<1x8xf32>,
    return
  }
  func.func @transform_0(%arg0: i32) -> (i32, i32) {
    %c0_i32 = arith.constant 0 : i32
    %c0_i32_0 = arith.constant 0 : i32
    return %arg0, %c0_i32 : i32, i32
  }
  func.func @transform_1(%arg0: i32) -> (i32, i32) {
    %c0_i32 = arith.constant 0 : i32
    %c0_i32_0 = arith.constant 0 : i32
    return %arg0, %c0_i32 : i32, i32
  }
  func.func @transform_2(%arg0: i32) -> (i32, i32) {
    %c0_i32 = arith.constant 0 : i32
    %c0_i32_0 = arith.constant 0 : i32
    %c0_i32_1 = arith.constant 0 : i32
    return %c0_i32, %c0_i32_0 : i32, i32
  }
  func.func @transform_3(%arg0: i32) -> (i32, i32) {
    %c0_i32 = arith.constant 0 : i32
    %c0_i32_0 = arith.constant 0 : i32
    %c0_i32_1 = arith.constant 0 : i32
    return %c0_i32, %c0_i32_0 : i32, i32
  }
  func.func @transform_4(%arg0: i32) -> (i32, i32) {
    %c0_i32 = arith.constant 0 : i32
    %c0_i32_0 = arith.constant 0 : i32
    %c0_i32_1 = arith.constant 0 : i32
    return %c0_i32, %c0_i32_0 : i32, i32
  }
  func.func @transform_5(%arg0: i32) -> (i32, i32) {
    %c0_i32 = arith.constant 0 : i32
    %c0_i32_0 = arith.constant 0 : i32
    %c0_i32_1 = arith.constant 0 : i32
    return %c0_i32, %c0_i32_0 : i32, i32
  }
  func.func @transform_6(%arg0: i32) -> (i32, i32) {
    %c0_i32 = arith.constant 0 : i32
    %c0_i32_0 = arith.constant 0 : i32
    %c0_i32_1 = arith.constant 0 : i32
    return %c0_i32, %c0_i32_0 : i32, i32
  }
  func.func @transform_7(%arg0: i32) -> (i32, i32) {
    %c0_i32 = arith.constant 0 : i32
    %c0_i32_0 = arith.constant 0 : i32
    %c0_i32_1 = arith.constant 0 : i32
    return %c0_i32, %c0_i32_0 : i32, i32
  }
  func.func @transform_8(%arg0: i32) -> (i32, i32) {
    %c0_i32 = arith.constant 0 : i32
    %c0_i32_0 = arith.constant 0 : i32
    %c0_i32_1 = arith.constant 0 : i32
    return %c0_i32, %c0_i32_0 : i32, i32
  }
  func.func @transform_9(%arg0: i32) -> (i32, i32) {
    %c0_i32 = arith.constant 0 : i32
    %c0_i32_0 = arith.constant 0 : i32
    %c0_i32_1 = arith.constant 0 : i32
    return %c0_i32, %c0_i32_0 : i32, i32
  }
  func.func @transform_10(%arg0: i32) -> (i32, i32) {
    %c0_i32 = arith.constant 0 : i32
    %c0_i32_0 = arith.constant 0 : i32
    return %c0_i32, %arg0 : i32, i32
  }
}

</mosaic_0001>

<llo_original>
// kernel: tpu_custom_call.1
$region0: #{tpu_custom_call.1}
  #allocation0 [shape = 'u32[]', space=smem, size = 0x4, offset = 0x4, fixed_abs, tag = 'smem constant byte address 0x4 - core index']
  #allocation1 [shape = 'u32[144,128]{1,0:T(1,128)}', space=vmem, size = 0x12000, scoped, tag = 'internal scratch']
  #allocation2 [shape = 'f32[1,1]{1,0:T(1,128)S(1)}', space=vmem, size = 0x200, scoped, tag = 'scoped memory for tpu_custom_call.1']
  %s0 = inlined_call_operand.vmem [shape: f32[8,6], index: 0, kind: input, shape index: {}]
  %s1 = inlined_call_operand.vmem [shape: s32[8,3], index: 1, kind: input, shape index: {}]
  %s2 = inlined_call_operand.vmem [shape: bf16[23,12], index: 2, kind: input, shape index: {}]
  %s3 = inlined_call_operand.vmem [shape: bf16[6,32], index: 3, kind: input, shape index: {}]
  %s4 = inlined_call_operand.vmem [shape: bf16[12,32], index: 4, kind: input, shape index: {}]
  %s5 = inlined_call_operand.vmem [shape: f32[1,32], index: 5, kind: input, shape index: {}]
  %s6 = inlined_call_operand.vmem [shape: bf16[32,32], index: 6, kind: input, shape index: {}]
  %s7 = inlined_call_operand.vmem [shape: f32[1,32], index: 7, kind: input, shape index: {}]
  %s8 = inlined_call_operand.vmem [shape: bf16[1,32], index: 8, kind: input, shape index: {}]
  %s9 = inlined_call_operand.<no memory space> [shape: f32[1,1], index: 9, kind: input, shape index: {}]
  %s10 = inlined_call_operand.hbm [shape: f32[1,8], index: 10, kind: output, shape index: {}]
  %s11 = sld [smem:[#allocation0]]
  $region50: #{tpu_custom_call.1} parent=0
    _
  %s13 = ssub.s32 1, %s11
  %s14 = scalar_select 0, %s13, %s11
  %v15 = vstv %s9
  %16 = vst [vmem:[#allocation2] sm:$0x1] %v15
  $region1: #{tpu_custom_call.1} parent=0
    #allocation3 [shape = 'u8[512]{0}', space=vmem, size = 0x400, scoped, tag = 'output window, operand 0, single buffered']
    #allocation4 [shape = 's32[1]{0}', space=sflag, size = 0x4, scoped, tag = 'scoped memory for tpu_custom_call.1']
    %17 = vsyncpa [#allocation4], 0
    // Predicated region
    $region2: #{tpu_custom_call.1} parent=1 // pred_check
      _
    $region3: #{tpu_custom_call.1} parent=1 // pred_check_branch
      %19 = sbr.rel (0) target = $region5
    $region4: #{tpu_custom_call.1} parent=1 // pred_region
      _
    $region5: #{tpu_custom_call.1} parent=1 // pred_fallthru
      _
    // Predicated region
    $region6: #{tpu_custom_call.1} parent=1 // pred_check
      _
    $region7: #{tpu_custom_call.1} parent=1 // pred_check_branch
      %21 = sbr.rel (0) target = $region9
    $region8: #{tpu_custom_call.1} parent=1 // pred_region
      _
    $region9: #{tpu_custom_call.1} parent=1 // pred_fallthru
      _
    // Predicated region
    $region10: #{tpu_custom_call.1} parent=1 // pred_check
      _
    $region11: #{tpu_custom_call.1} parent=1 // pred_check_branch
      %23 = sbr.rel (0) target = $region13
    $region12: #{tpu_custom_call.1} parent=1 // pred_region
      _
    $region13: #{tpu_custom_call.1} parent=1 // pred_fallthru
      _
    // Predicated region
    $region14: #{tpu_custom_call.1} parent=1 // pred_check
      _
    $region15: #{tpu_custom_call.1} parent=1 // pred_check_branch
      %25 = sbr.rel (0) target = $region17
    $region16: #{tpu_custom_call.1} parent=1 // pred_region
      _
    $region17: #{tpu_custom_call.1} parent=1 // pred_fallthru
      _
    // Predicated region
    $region18: #{tpu_custom_call.1} parent=1 // pred_check
      _
    $region19: #{tpu_custom_call.1} parent=1 // pred_check_branch
      %27 = sbr.rel (0) target = $region21
    $region20: #{tpu_custom_call.1} parent=1 // pred_region
      _
    $region21: #{tpu_custom_call.1} parent=1 // pred_fallthru
      _
    // Predicated region
    $region22: #{tpu_custom_call.1} parent=1 // pred_check
      _
    $region23: #{tpu_custom_call.1} parent=1 // pred_check_branch
      %29 = sbr.rel (0) target = $region25
    $region24: #{tpu_custom_call.1} parent=1 // pred_region
      _
    $region25: #{tpu_custom_call.1} parent=1 // pred_fallthru
      _
    // Predicated region
    $region26: #{tpu_custom_call.1} parent=1 // pred_check
      _
    $region27: #{tpu_custom_call.1} parent=1 // pred_check_branch
      %31 = sbr.rel (0) target = $region29
    $region28: #{tpu_custom_call.1} parent=1 // pred_region
      _
    $region29: #{tpu_custom_call.1} parent=1 // pred_fallthru
      _
    // Predicated region
    $region30: #{tpu_custom_call.1} parent=1 // pred_check
      _
    $region31: #{tpu_custom_call.1} parent=1 // pred_check_branch
      %33 = sbr.rel (0) target = $region33
    $region32: #{tpu_custom_call.1} parent=1 // pred_region
      _
    $region33: #{tpu_custom_call.1} parent=1 // pred_fallthru
      _
    // Predicated region
    $region34: #{tpu_custom_call.1} parent=1 // pred_check
      _
    $region35: #{tpu_custom_call.1} parent=1 // pred_check_branch
      %35 = sbr.rel (0) target = $region37
    $region36: #{tpu_custom_call.1} parent=1 // pred_region
      _
    $region37: #{tpu_custom_call.1} parent=1 // pred_fallthru
      _
    // Predicated region
    $region38: #{tpu_custom_call.1} parent=1 // pred_check
      _
    $region39: #{tpu_custom_call.1} parent=1 // pred_check_branch
      %37 = sbr.rel (0) target = $region41
    $region40: #{tpu_custom_call.1} parent=1 // pred_region
      _
    $region41: #{tpu_custom_call.1} parent=1 // pred_fallthru
      _
    %v39 = vld [vmem:[%s1] sm:$0xff]
    %v40 = vlaneseq
    %v41 = vand.u32 %v40, 127
    %42 = vset.pattern.permute.xlu0 0
    %43 = vperm.xlu0 %42, %v39
    %v44 = vpop.permute.xlu0 %43
    %vm45 = vcmp.eq.s32.totalorder %v41, %v44
    %v46 = vsel %vm45, 1, 0
    %v47 = vcvt.s32.f32 %v46
    %v48 = vadd.f32 %v47, 0.0
    %v49 = vadd.s32 %v39, 5
    %50 = vset.pattern.permute.xlu0 1
    %51 = vperm.xlu0 %50, %v49
    %v52 = vpop.permute.xlu0 %51
    %vm53 = vcmp.eq.s32.totalorder %v41, %v52
    %v54 = vsel %vm53, 1, 0
    %v55 = vcvt.s32.f32 %v54
    %v56 = vadd.f32 %v48, %v55
    %v57 = vadd.s32 %v39, 12
    %58 = vset.pattern.permute.xlu0 2
    %59 = vperm.xlu0 %58, %v57
    %v60 = vpop.permute.xlu0 %59
    %vm61 = vcmp.eq.s32.totalorder %v41, %v60
    %v62 = vsel %vm61, 1, 0
    %v63 = vcvt.s32.f32 %v62
    %v64 = vadd.f32 %v56, %v63
    %v65 = vpack.c.bf16 %v64, %v64
    %v66 = vld [vmem:[%s2] sm:$0xf]
    %v67 = vld [vmem:[%s2 + $0x4] sm:$0xf]
    %v68 = vld [vmem:[%s2 + $0x8] sm:$0xf]
    %v72 = vunpack.c.l.b16 %v66
    %v73 = vunpack.c.l.b16 %v67
    %v74 = vunpack.c.l.b16 %v68
    %v75 = vpack.c.b16 %v73, %v72
    %v76 = vpack.c.b16 %v74, %v74
    %vm78 = vcmask 187392
    %v80 = vsel %vm78, %v65, 0
    %vm82 = vcmask 1042432
    %vm83 = vcmask 1043456
    %v84 = vsel %vm82, 4294967295, 65535
    %v85 = vsel %vm83, %v84, 0
    %v87 = vand.u32 %v76, %v85
    %89 = vmatprep.subr.bf16.mxu0 0
    %90 = vmatpush1.bf16.msra.mxu0 %v75
    %91 = vmatprep.subr.bf16.mxu0 0
    %92 = vmatpush1.bf16.msra.mxu0 %v87
    %93 = vmatprep.subr.bf16.mxu0 0
    %94 = vmatpush1.bf16.msra.mxu0 0
    %95 = vmatprep.subr.bf16.mxu0 0
    %96 = vmatpush1.bf16.msra.mxu0 0
    %97 = vmatprep.subr.bf16.mxu0 0
    %98 = vmatpush1.bf16.msra.mxu0 0
    %99 = vmatprep.subr.bf16.mxu0 0
    %100 = vmatpush1.bf16.msra.mxu0 0
    %101 = vmatprep.subr.bf16.mxu0 0
    %102 = vmatpush1.bf16.msra.mxu0 0
    %103 = vmatprep.subr.bf16.mxu0 0
    %104 = vmatpush1.bf16.msra.mxu0 0
    %105 = vmatprep.subr.bf16.mxu0 0
    %106 = vmatpush1.bf16.msra.mxu0 0
    %107 = vmatprep.subr.bf16.mxu0 0
    %108 = vmatpush1.bf16.msra.mxu0 0
    %109 = vmatprep.subr.bf16.mxu0 0
    %110 = vmatpush1.bf16.msra.mxu0 0
    %111 = vmatprep.subr.bf16.mxu0 0
    %112 = vmatpush1.bf16.msra.mxu0 0
    %113 = vmatprep.subr.bf16.mxu0 0
    %114 = vmatpush1.bf16.msra.mxu0 0
    %115 = vmatprep.subr.bf16.mxu0 0
    %116 = vmatpush1.bf16.msra.mxu0 0
    %117 = vmatprep.subr.bf16.mxu0 0
    %118 = vmatpush1.bf16.msra.mxu0 0
    %119 = vmatprep.subr.bf16.mxu0 0
    %120 = vmatpush1.bf16.msra.mxu0 0
    %121 = vmatprep.mubr.bf16.mxu0 0
    %122 = vmatmul.mubr.bf16.gmra.mrb[0].mxu0 %v80
    %v123 = vpop.f32.mrb[0].mxu0
    %v124 = vadd.f32 0.0, %v123
    %v125 = vpop.f32.mrb[0].mxu0
    %v126 = vpop.f32.mrb[0].mxu0
    %v127 = vpop.f32.mrb[0].mxu0
    %128 = vdwg.mxu0
    %v129 = vld [vmem:[%s0] sm:$0xff]
    %v130 = vpack.c.bf16 %v129, %v129
    %v131 = vld [vmem:[%s3] sm:$0x7]
    %v132 = vpack.c.bf16 %v124, %v124
    %v133 = vld [vmem:[%s4] sm:$0xf]
    %v134 = vld [vmem:[%s4 + $0x4] sm:$0x3]
    %v137 = vunpack.c.l.b16 %v133
    %v138 = vunpack.c.l.b16 %v134
    %v139 = vpack.c.b16 %v138, %v137
    %vm140 = vcmask 97280
    %v142 = vsel %vm140, %v132, 0
    %vm144 = vcmask 1045504
    %v146 = vsel %vm144, %v139, 0
    %148 = vmatprep.subr.bf16.mxu0 0
    %149 = vmatpush1.bf16.msra.mxu0 %v146
    %150 = vmatprep.subr.bf16.mxu0 0
    %151 = vmatpush1.bf16.msra.mxu0 0
    %152 = vmatprep.subr.bf16.mxu0 0
    %153 = vmatpush1.bf16.msra.mxu0 0
    %154 = vmatprep.subr.bf16.mxu0 0
    %155 = vmatpush1.bf16.msra.mxu0 0
    %156 = vmatprep.subr.bf16.mxu0 0
    %157 = vmatpush1.bf16.msra.mxu0 0
    %158 = vmatprep.subr.bf16.mxu0 0
    %159 = vmatpush1.bf16.msra.mxu0 0
    %160 = vmatprep.subr.bf16.mxu0 0
    %161 = vmatpush1.bf16.msra.mxu0 0
    %162 = vmatprep.subr.bf16.mxu0 0
    %163 = vmatpush1.bf16.msra.mxu0 0
    %164 = vmatprep.subr.bf16.mxu0 0
    %165 = vmatpush1.bf16.msra.mxu0 0
    %166 = vmatprep.subr.bf16.mxu0 0
    %167 = vmatpush1.bf16.msra.mxu0 0
    %168 = vmatprep.subr.bf16.mxu0 0
    %169 = vmatpush1.bf16.msra.mxu0 0
    %170 = vmatprep.subr.bf16.mxu0 0
    %171 = vmatpush1.bf16.msra.mxu0 0
    %172 = vmatprep.subr.bf16.mxu0 0
    %173 = vmatpush1.bf16.msra.mxu0 0
    %174 = vmatprep.subr.bf16.mxu0 0
    %175 = vmatpush1.bf16.msra.mxu0 0
    %176 = vmatprep.subr.bf16.mxu0 0
    %177 = vmatpush1.bf16.msra.mxu0 0
    %178 = vmatprep.subr.bf16.mxu0 0
    %179 = vmatpush1.bf16.msra.mxu0 0
    %180 = vmatprep.mubr.bf16.mxu0 0
    %181 = vmatmul.mubr.bf16.gmra.mrb[0].mxu0 %v142
    %v182 = vpop.f32.mrb[0].mxu0
    %v183 = vadd.f32 0.0, %v182
    %v184 = vpop.f32.mrb[0].mxu0
    %v185 = vpop.f32.mrb[0].mxu0
    %v186 = vpop.f32.mrb[0].mxu0
    %187 = vdwg.mxu0
    %vm188 = vcmask 48128
    %v190 = vsel %vm188, %v130, 0
    %v193 = vsel %vm82, %v131, 0
    %195 = vmatprep.subr.bf16.mxu0 0
    %196 = vmatpush1.bf16.msra.mxu0 %v193
    %197 = vmatprep.subr.bf16.mxu0 0
    %198 = vmatpush1.bf16.msra.mxu0 0
    %199 = vmatprep.subr.bf16.mxu0 0
    %200 = vmatpush1.bf16.msra.mxu0 0
    %201 = vmatprep.subr.bf16.mxu0 0
    %202 = vmatpush1.bf16.msra.mxu0 0
    %203 = vmatprep.subr.bf16.mxu0 0
    %204 = vmatpush1.bf16.msra.mxu0 0
    %205 = vmatprep.subr.bf16.mxu0 0
    %206 = vmatpush1.bf16.msra.mxu0 0
    %207 = vmatprep.subr.bf16.mxu0 0
    %208 = vmatpush1.bf16.msra.mxu0 0
    %209 = vmatprep.subr.bf16.mxu0 0
    %210 = vmatpush1.bf16.msra.mxu0 0
    %211 = vmatprep.subr.bf16.mxu0 0
    %212 = vmatpush1.bf16.msra.mxu0 0
    %213 = vmatprep.subr.bf16.mxu0 0
    %214 = vmatpush1.bf16.msra.mxu0 0
    %215 = vmatprep.subr.bf16.mxu0 0
    %216 = vmatpush1.bf16.msra.mxu0 0
    %217 = vmatprep.subr.bf16.mxu0 0
    %218 = vmatpush1.bf16.msra.mxu0 0
    %219 = vmatprep.subr.bf16.mxu0 0
    %220 = vmatpush1.bf16.msra.mxu0 0
    %221 = vmatprep.subr.bf16.mxu0 0
    %222 = vmatpush1.bf16.msra.mxu0 0
    %223 = vmatprep.subr.bf16.mxu0 0
    %224 = vmatpush1.bf16.msra.mxu0 0
    %225 = vmatprep.subr.bf16.mxu0 0
    %226 = vmatpush1.bf16.msra.mxu0 0
    %227 = vmatprep.mubr.bf16.mxu0 0
    %228 = vmatmul.mubr.bf16.gmra.mrb[0].mxu0 %v190
    %v229 = vpop.f32.mrb[0].mxu0
    %v230 = vadd.f32 %v183, %v229
    %v231 = vpop.f32.mrb[0].mxu0
    %v232 = vpop.f32.mrb[0].mxu0
    %v233 = vpop.f32.mrb[0].mxu0
    %234 = vdwg.mxu0
    %v235 = vld [vmem:[%s5] sm:$0x1]
    %v237 = vlaneseq
    %v238 = vshrl.u32 %v237, 7
    %v239 = vsub.s32 0, %v238
    %v240 = vrot.slane %v235, %v239
    %v242 = vadd.f32 %v230, %v240
    %v243 = vmax.f32 %v242, 0.0
    %v244 = vpack.c.bf16 %v243, %v243
    %v245 = vld [vmem:[%s6] sm:$0xf]
    %v246 = vld [vmem:[%s6 + $0x4] sm:$0xf]
    %v247 = vld [vmem:[%s6 + $0x8] sm:$0xf]
    %v248 = vld [vmem:[%s6 + $0xc] sm:$0xf]
    %v249 = vld [vmem:[%s7] sm:$0x1]
    %v251 = vlaneseq
    %v252 = vshrl.u32 %v251, 7
    %v253 = vsub.s32 0, %v252
    %v254 = vrot.slane %v249, %v253
    %v260 = vunpack.c.l.b16 %v245
    %v261 = vunpack.c.l.b16 %v246
    %v262 = vunpack.c.l.b16 %v247
    %v263 = vunpack.c.l.b16 %v248
    %v264 = vpack.c.b16 %v261, %v260
    %v265 = vpack.c.b16 %v263, %v262
    %vm268 = vcmask 261120
    %v270 = vsel %vm268, %v244, 0
    %272 = vmatprep.subr.bf16.mxu0 0
    %273 = vmatpush1.bf16.msra.mxu0 %v264
    %274 = vmatprep.subr.bf16.mxu0 0
    %275 = vmatpush1.bf16.msra.mxu0 %v265
    %276 = vmatprep.subr.bf16.mxu0 0
    %277 = vmatpush1.bf16.msra.mxu0 0
    %278 = vmatprep.subr.bf16.mxu0 0
    %279 = vmatpush1.bf16.msra.mxu0 0
    %280 = vmatprep.subr.bf16.mxu0 0
    %281 = vmatpush1.bf16.msra.mxu0 0
    %282 = vmatprep.subr.bf16.mxu0 0
    %283 = vmatpush1.bf16.msra.mxu0 0
    %284 = vmatprep.subr.bf16.mxu0 0
    %285 = vmatpush1.bf16.msra.mxu0 0
    %286 = vmatprep.subr.bf16.mxu0 0
    %287 = vmatpush1.bf16.msra.mxu0 0
    %288 = vmatprep.subr.bf16.mxu0 0
    %289 = vmatpush1.bf16.msra.mxu0 0
    %290 = vmatprep.subr.bf16.mxu0 0
    %291 = vmatpush1.bf16.msra.mxu0 0
    %292 = vmatprep.subr.bf16.mxu0 0
    %293 = vmatpush1.bf16.msra.mxu0 0
    %294 = vmatprep.subr.bf16.mxu0 0
    %295 = vmatpush1.bf16.msra.mxu0 0
    %296 = vmatprep.subr.bf16.mxu0 0
    %297 = vmatpush1.bf16.msra.mxu0 0
    %298 = vmatprep.subr.bf16.mxu0 0
    %299 = vmatpush1.bf16.msra.mxu0 0
    %300 = vmatprep.subr.bf16.mxu0 0
    %301 = vmatpush1.bf16.msra.mxu0 0
    %302 = vmatprep.subr.bf16.mxu0 0
    %303 = vmatpush1.bf16.msra.mxu0 0
    %304 = vmatprep.mubr.bf16.mxu0 0
    %305 = vmatmul.mubr.bf16.gmra.mrb[0].mxu0 %v270
    %v306 = vpop.f32.mrb[0].mxu0
    %v307 = vadd.f32 %v254, %v306
    %v308 = vpop.f32.mrb[0].mxu0
    %v309 = vpop.f32.mrb[0].mxu0
    %v310 = vpop.f32.mrb[0].mxu0
    %311 = vdwg.mxu0
    %v312 = vmax.f32 %v307, 0.0
    %v313 = vld [vmem:[%s8] sm:$0x1]
    %v314 = vpack.c.bf16 %v312, %v312
    %v315 = vld [vmem:[#allocation2] sm:$0x1]
    %317 = vset.pattern.permute.xlu0 0
    %318 = vperm.xlu0 %317, %v315
    %v319 = vpop.permute.xlu0 %318
    %v321 = vlaneseq
    %v322 = vshrl.u32 %v321, 7
    %v323 = vsub.s32 0, %v322
    %v324 = vrot.slane %v319, %v323
    %v326 = vsel %vm268, %v313, 0
    %v329 = vsel %vm268, %v314, 0
    %331 = vmatprep.subr.bf16.mxu0 0
    %332 = vmatpush1.bf16.xpose.msra.mxu0 %v329
    %333 = vmatprep.subr.bf16.mxu0 0
    %334 = vmatpush1.bf16.xpose.msra.mxu0 0
    %335 = vmatprep.subr.bf16.mxu0 0
    %336 = vmatpush1.bf16.xpose.msra.mxu0 0
    %337 = vmatprep.subr.bf16.mxu0 0
    %338 = vmatpush1.bf16.xpose.msra.mxu0 0
    %339 = vmatprep.subr.bf16.mxu0 0
    %340 = vmatpush1.bf16.xpose.msra.mxu0 0
    %341 = vmatprep.subr.bf16.mxu0 0
    %342 = vmatpush1.bf16.xpose.msra.mxu0 0
    %343 = vmatprep.subr.bf16.mxu0 0
    %344 = vmatpush1.bf16.xpose.msra.mxu0 0
    %345 = vmatprep.subr.bf16.mxu0 0
    %346 = vmatpush1.bf16.xpose.msra.mxu0 0
    %347 = vmatprep.subr.bf16.mxu0 0
    %348 = vmatpush1.bf16.xpose.msra.mxu0 0
    %349 = vmatprep.subr.bf16.mxu0 0
    %350 = vmatpush1.bf16.xpose.msra.mxu0 0
    %351 = vmatprep.subr.bf16.mxu0 0
    %352 = vmatpush1.bf16.xpose.msra.mxu0 0
    %353 = vmatprep.subr.bf16.mxu0 0
    %354 = vmatpush1.bf16.xpose.msra.mxu0 0
    %355 = vmatprep.subr.bf16.mxu0 0
    %356 = vmatpush1.bf16.xpose.msra.mxu0 0
    %357 = vmatprep.subr.bf16.mxu0 0
    %358 = vmatpush1.bf16.xpose.msra.mxu0 0
    %359 = vmatprep.subr.bf16.mxu0 0
    %360 = vmatpush1.bf16.xpose.msra.mxu0 0
    %361 = vmatprep.subr.bf16.mxu0 0
    %362 = vmatpush1.bf16.xpose.msra.mxu0 0
    %363 = vmatprep.mubr.bf16.mxu0 0
    %364 = vmatmul.mubr.bf16.gmra.mrb[0].mxu0 %v326
    %v365 = vpop.f32.mrb[0].mxu0
    %v366 = vadd.f32 %v324, %v365
    %v367 = vpop.f32.mrb[0].mxu0
    %v368 = vpop.f32.mrb[0].mxu0
    %v369 = vpop.f32.mrb[0].mxu0
    %370 = vdwg.mxu0
    %vm371 = vcmask 57344
    %372 = vst.msk [vmem:[#allocation3] sm:$0x1] %vm371, %v366
    // Predicated region
    $region42: #{tpu_custom_call.1} parent=1 // pred_check
      _
    $region43: #{tpu_custom_call.1} parent=1 // pred_check_branch
      %374 = sbr.rel (0) target = $region45
    $region44: #{tpu_custom_call.1} parent=1 // pred_region
      %s376 = ssub.s32 16, 16
      %377 = vsyncadd [#allocation4], %s376
      %s379 = sshll.u32 [#allocation3], 4
      %s380 = int_to_ptr.vmem [resolvable:$true] %s379
      %382 = dma.vmem_to_hbm [thread:$0]  %s380, 16, %s10, [#allocation4]
    $region45: #{tpu_custom_call.1} parent=1 // pred_fallthru
      _
    // Predicated region
    $region46: #{tpu_custom_call.1} parent=1 // pred_check
      _
    $region47: #{tpu_custom_call.1} parent=1 // pred_check_branch
      %384 = sbr.rel (0) target = $region49
    $region48: #{tpu_custom_call.1} parent=1 // pred_region
      %385 = dma.done [#allocation4], 16
    $region49: #{tpu_custom_call.1} parent=1 // pred_fallthru
      _
    %386 = vsyncpa [#allocation4], 1

</llo_original>
